<compile_context>
chip_gen: v6e
topology: v6e:2x2x1
jax: 0.10.0
libtpu: 0.0.40
codegen_flags: <defaults>
</compile_context>

<pallas_src>
import functools

import jax
import jax.numpy as jnp
from jax import lax
from jax.experimental import pallas as pl
from jax.experimental.pallas import tpu as pltpu

_VMEM_LIMIT = 32 * 1024 * 1024  # portable across v5e/v6e (128 MiB) and v7x (64 MiB)


def _pick_row_tile(n, target):
    """Largest multiple-of-8 divisor of n that is <= target; else full n."""
    t = min(target, n)
    while t >= 8:
        if n % t == 0 and t % 8 == 0:
            return t
        t -= 1
    return n


# ----------------------------------------------------------------------------
# Kernel 1: fused QKV projection + scale-fold + q/k/v split (no bias)
# ----------------------------------------------------------------------------
def _qkv_kernel(x_ref, w_ref, q_ref, k_ref, v_ref, *, inner_dim, scale):
    x = x_ref[0]                                        # (tn, dim)
    w = w_ref[...]                                      # (dim, 3*inner)
    qkv = jnp.dot(x, w, preferred_element_type=jnp.float32)
    # Fold the softmax scale into q here: (tn, h*d) multiply, not (n, n).
    q_ref[0] = (qkv[:, :inner_dim] * scale).astype(q_ref.dtype)
    k_ref[0] = qkv[:, inner_dim:2 * inner_dim].astype(k_ref.dtype)
    v_ref[0] = qkv[:, 2 * inner_dim:].astype(v_ref.dtype)


def qkv_projection(x, w_qkv, scale, *, row_tile=256):
    """x: (b, n, dim), w_qkv: (dim, 3*h*d) -> q, k, v each (b, n, h*d)."""
    b, n, dim = x.shape
    inner3 = w_qkv.shape[1]
    inner = inner3 // 3
    tn = _pick_row_tile(n, row_tile)
    out = jax.ShapeDtypeStruct((b, n, inner), x.dtype)
    return pl.pallas_call(
        functools.partial(_qkv_kernel, inner_dim=inner, scale=scale),
        out_shape=(out, out, out),
        grid=(b, n // tn),
        in_specs=[
            pl.BlockSpec((1, tn, dim), lambda i, j: (i, j, 0)),
            pl.BlockSpec((dim, inner3), lambda i, j: (0, 0)),   # weight resident
        ],
        out_specs=[
            pl.BlockSpec((1, tn, inner), lambda i, j: (i, j, 0)),
            pl.BlockSpec((1, tn, inner), lambda i, j: (i, j, 0)),
            pl.BlockSpec((1, tn, inner), lambda i, j: (i, j, 0)),
        ],
        compiler_params=pltpu.CompilerParams(
            dimension_semantics=("parallel", "parallel"),
            vmem_limit_bytes=_VMEM_LIMIT),
    )(x, w_qkv)


# ----------------------------------------------------------------------------
# Kernel 2: flash-style multi-head attention + fused output projection
#   grid = (batch, q_tiles, kv_tiles); kv axis is the reduction ("arbitrary").
#   q/k/v stay packed as (tile, h*d); heads are static column slices.
# ----------------------------------------------------------------------------
def _attn_out_kernel(q_ref, k_ref, v_ref, wout_ref, bout_ref, o_ref,
                     m_ref, l_ref, acc_ref, *, heads, dim_head):
    kv_i = pl.program_id(2)

    @pl.when(kv_i == 0)
    def _():
        m_ref[...] = jnp.full(m_ref.shape, -jnp.inf, dtype=m_ref.dtype)
        l_ref[...] = jnp.zeros(l_ref.shape, dtype=l_ref.dtype)
        acc_ref[...] = jnp.zeros(acc_ref.shape, dtype=acc_ref.dtype)

    q = q_ref[0]                                        # (tq, h*d), pre-scaled
    k = k_ref[0]                                        # (tk, h*d)
    v = v_ref[0]                                        # (tk, h*d)
    d = dim_head

    for h in range(heads):
        lo = h * d
        qh = q[:, lo:lo + d]                            # (tq, d)
        kh = k[:, lo:lo + d]                            # (tk, d)
        vh = v[:, lo:lo + d]                            # (tk, d)
        # q @ k^T without an explicit transpose: contract last dims directly.
        s = lax.dot_general(qh, kh, (((1,), (1,)), ((), ())),
                            preferred_element_type=jnp.float32)     # (tq, tk)
        m_prev = m_ref[:, h:h + 1]                                    # (tq, 1)
        m_new = jnp.maximum(m_prev, jnp.max(s, axis=-1, keepdims=True))
        alpha = jnp.exp(m_prev - m_new)
        p = jnp.exp(s - m_new)                                        # (tq, tk)
        l_ref[:, h:h + 1] = alpha * l_ref[:, h:h + 1] + jnp.sum(
            p, axis=-1, keepdims=True)
        acc_ref[:, lo:lo + d] = alpha * acc_ref[:, lo:lo + d] + jnp.dot(
            p.astype(vh.dtype), vh, preferred_element_type=jnp.float32)
        m_ref[:, h:h + 1] = m_new

    @pl.when(kv_i == pl.num_programs(2) - 1)
    def _():
        # Per-head normalization, then fused output projection + bias.
        inv_l = pl.reciprocal(l_ref[...], approx=True)   # (tq, heads), EUP slot
        for h in range(heads):
            lo = h * d
            acc_ref[:, lo:lo + d] = acc_ref[:, lo:lo + d] * inv_l[:, h:h + 1]
        attn_out = acc_ref[...]                                       # (tq, h*d)
        out = jnp.dot(attn_out.astype(wout_ref.dtype), wout_ref[...],
                      preferred_element_type=jnp.float32)             # (tq, dim)
        out = out + bout_ref[...].astype(jnp.float32)                 # (1, dim)
        o_ref[0] = out.astype(o_ref.dtype)


def attention_flash_out(q, k, v, w_out, b_out, *, heads, dim_head,
                        q_tile=256, kv_tile=512):
    """q,k,v: (b, n, h*d); w_out: (h*d, dim); b_out: (dim,) -> (b, n, dim)."""
    b, n, inner = q.shape
    dim = w_out.shape[1]
    tq = _pick_row_tile(n, q_tile)
    tk = _pick_row_tile(n, kv_tile)
    bias2d = b_out.reshape(1, dim)
    kernel = functools.partial(_attn_out_kernel, heads=heads, dim_head=dim_head)
    return pl.pallas_call(
        kernel,
        out_shape=jax.ShapeDtypeStruct((b, n, dim), q.dtype),
        grid=(b, n // tq, n // tk),
        in_specs=[
            pl.BlockSpec((1, tq, inner), lambda bi, qi, ki: (bi, qi, 0)),
            pl.BlockSpec((1, tk, inner), lambda bi, qi, ki: (bi, ki, 0)),
            pl.BlockSpec((1, tk, inner), lambda bi, qi, ki: (bi, ki, 0)),
            pl.BlockSpec((inner, dim), lambda bi, qi, ki: (0, 0)),   # resident
            pl.BlockSpec((1, dim), lambda bi, qi, ki: (0, 0)),       # resident
        ],
        out_specs=pl.BlockSpec((1, tq, dim), lambda bi, qi, ki: (bi, qi, 0)),
        scratch_shapes=[
            pltpu.VMEM((tq, heads), jnp.float32),   # running max per head
            pltpu.VMEM((tq, heads), jnp.float32),   # running denom per head
            pltpu.VMEM((tq, inner), jnp.float32),   # running (tq, h*d) acc
        ],
        compiler_params=pltpu.CompilerParams(
            dimension_semantics=("parallel", "parallel", "arbitrary"),
            vmem_limit_bytes=_VMEM_LIMIT),
    )(q, k, v, w_out, bias2d)


# ----------------------------------------------------------------------------
# Module wrapper
# ----------------------------------------------------------------------------
class AttentionPallas:
    def __init__(self, dim, heads=8, dim_head=64, dropout=0.0, key=None):
        inner_dim = dim_head * heads
        self.dim = dim
        self.heads = heads
        self.dim_head = dim_head
        self.scale = dim ** (-0.5)          # module uses dim, not dim_head
        if key is None:
            key = jax.random.PRNGKey(0)
        k1, k2, k3 = jax.random.split(key, 3)
        bound_qkv = 1.0 / (dim ** 0.5)
        bound_out = 1.0 / (inner_dim ** 0.5)
        # stored as (in, out) so kernels compute x @ W (== x @ W_torch.T)
        self.w_qkv = jax.random.uniform(
            k1, (dim, inner_dim * 3), jnp.float32, -bound_qkv, bound_qkv)
        self.w_out = jax.random.uniform(
            k2, (inner_dim, dim), jnp.float32, -bound_out, bound_out)
        self.b_out = jax.random.uniform(
            k3, (dim,), jnp.float32, -bound_out, bound_out)
        # Dropout(p=0.0) == identity

    def __call__(self, x, mask=None):
        assert mask is None  # TODO(synk): masked-softmax path not implemented
        q, k, v = qkv_projection(x, self.w_qkv, self.scale)
        return attention_flash_out(q, k, v, self.w_out, self.b_out,
                                   heads=self.heads, dim_head=self.dim_head)


# ----------------------------------------------------------------------------
# Pure-JAX reference (for sanity checking)
# ----------------------------------------------------------------------------
def reference_forward(module, x):
    b, n, _ = x.shape
    h, d = module.heads, module.dim_head
    qkv = x @ module.w_qkv
    q, k, v = jnp.split(qkv, 3, axis=-1)
    q, k, v = (t.reshape(b, n, h, d).transpose(0, 2, 1, 3) for t in (q, k, v))
    dots = jnp.einsum("bhid,bhjd->bhij", q, k) * module.scale
    attn = jax.nn.softmax(dots, axis=-1)
    out = jnp.einsum("bhij,bhjd->bhid", attn, v)
    out = out.transpose(0, 2, 1, 3).reshape(b, n, h * d)
    return out @ module.w_out + module.b_out


if __name__ == "__main__":
    key = jax.random.PRNGKey(0)
    k_param, k_x = jax.random.split(key)

    # Small shapes consistent with the module: (batch=2, seq=8, dim=32)
    batch, seq, dim = 2, 8, 32
    heads, dim_head = 4, 16

    module = AttentionPallas(dim, heads=heads, dim_head=dim_head, key=k_param)
    x = jax.random.normal(k_x, (batch, seq, dim), dtype=jnp.float32)

    out = module(x)
    out = jax.block_until_ready(out)

    ref = reference_forward(module, x)
    assert out.shape == (batch, seq, dim)
    # tolerance accounts for the EUP approximate reciprocal in the softmax
    assert jnp.allclose(out, ref, atol=5e-3, rtol=5e-3), float(
        jnp.max(jnp.abs(out - ref)))

    print("KERNEL_OK")
</pallas_src>

<mosaic_0001>
module attributes {stable_mosaic.version = 11 : i64} {
  func.func @_qkv_kernel(%arg0: i32, %arg1: i32, %arg2: memref<1x8x32xf32, #tpu.memory_space<vmem>>, %arg3: memref<32x192xf32, #tpu.memory_space<vmem>>, %arg4: memref<1x8x64xf32, #tpu.memory_space<vmem>>, %arg5: memref<1x8x64xf32, #tpu.memory_space<vmem>>, %arg6: memref<1x8x64xf32, #tpu.memory_space<vmem>>) attributes {dimension_semantics = [#tpu.dimension_semantics<parallel>, #tpu.dimension_semantics<parallel>], iteration_bounds = array<i64: 2, 1>, scalar_prefetch = 0 : i64, scratch_operands = 0 : i64, tpu.core_type = #tpu.core_type<tc>, window_params = [{transform_indices = @transform_0, window_bounds = array<i64: 1, 8, 32>}, {pipeline_mode = #tpu.pipeline_mode<synchronous>, transform_indices = @transform_1, window_bounds = array<i64: 32, 192>}, {transform_indices = @transform_2, window_bounds = array<i64: 1, 8, 64>}, {transform_indices = @transform_3, window_bounds = array<i64: 1, 8, 64>}, {transform_indices = @transform_4, window_bounds = array<i64: 1, 8, 64>}]} {
    %c0 = arith.constant 0 : index
    %c0_0 = arith.constant 0 : index
    %c0_1 = arith.constant 0 : index
    %0 = vector.load %arg2[%c0, %c0_0, %c0_1] : memref<1x8x32xf32, #tpu.memory_space<vmem>>, vector<1x8x32xf32>
    %1 = vector.shape_cast %0 : vector<1x8x32xf32> to vector<8x32xf32>
    %c0_2 = arith.constant 0 : index
    %c0_3 = arith.constant 0 : index
    %2 = vector.load %arg3[%c0_2, %c0_3] : memref<32x192xf32, #tpu.memory_space<vmem>>, vector<32x192xf32>
    %cst = arith.constant dense<0.000000e+00> : vector<8x192xf32>
    %3 = tpu.matmul %1, %2, %cst {dimension_numbers = #tpu.dot_dimension_numbers<[1], [0], [0], [1], [0, 0, 1, 1], [], []>} : vector<8x32xf32>, vector<32x192xf32>, vector<8x192xf32> -> vector<8x192xf32>
    %4 = vector.extract_strided_slice %3 {offsets = [0, 0], sizes = [8, 64], strides = [1, 1]} : vector<8x192xf32> to vector<8x64xf32>
    %cst_4 = arith.constant 0.176776692 : f32
    %5 = vector.broadcast %cst_4 : f32 to vector<8x64xf32>
    %6 = arith.mulf %4, %5 : vector<8x64xf32>
    %c0_5 = arith.constant 0 : index
    %c0_6 = arith.constant 0 : index
    %c0_7 = arith.constant 0 : index
    %7 = vector.load %arg4[%c0_5, %c0_6, %c0_7] : memref<1x8x64xf32, #tpu.memory_space<vmem>>, vector<1x8x64xf32>
    %8 = vector.shape_cast %7 : vector<1x8x64xf32> to vector<8x64xf32>
    %9 = vector.shape_cast %6 : vector<8x64xf32> to vector<1x8x64xf32>
    tpu.vector_store %arg4[%c0_5, %c0_6, %c0_7], %9 {strides = array<i32>} : memref<1x8x64xf32, #tpu.memory_space<vmem>>, vector<1x8x64xf32>,
    %10 = vector.extract_strided_slice %3 {offsets = [0, 64], sizes = [8, 64], strides = [1, 1]} : vector<8x192xf32> to vector<8x64xf32>
    %c0_8 = arith.constant 0 : index
    %c0_9 = arith.constant 0 : index
    %c0_10 = arith.constant 0 : index
    %11 = vector.load %arg5[%c0_8, %c0_9, %c0_10] : memref<1x8x64xf32, #tpu.memory_space<vmem>>, vector<1x8x64xf32>
    %12 = vector.shape_cast %11 : vector<1x8x64xf32> to vector<8x64xf32>
    %13 = vector.shape_cast %10 : vector<8x64xf32> to vector<1x8x64xf32>
    tpu.vector_store %arg5[%c0_8, %c0_9, %c0_10], %13 {strides = array<i32>} : memref<1x8x64xf32, #tpu.memory_space<vmem>>, vector<1x8x64xf32>,
    %14 = vector.extract_strided_slice %3 {offsets = [0, 128], sizes = [8, 64], strides = [1, 1]} : vector<8x192xf32> to vector<8x64xf32>
    %c0_11 = arith.constant 0 : index
    %c0_12 = arith.constant 0 : index
    %c0_13 = arith.constant 0 : index
    %15 = vector.load %arg6[%c0_11, %c0_12, %c0_13] : memref<1x8x64xf32, #tpu.memory_space<vmem>>, vector<1x8x64xf32>
    %16 = vector.shape_cast %15 : vector<1x8x64xf32> to vector<8x64xf32>
    %17 = vector.shape_cast %14 : vector<8x64xf32> to vector<1x8x64xf32>
    tpu.vector_store %arg6[%c0_11, %c0_12, %c0_13], %17 {strides = array<i32>} : memref<1x8x64xf32, #tpu.memory_space<vmem>>, vector<1x8x64xf32>,
    return
  }
  func.func @transform_0(%arg0: i32, %arg1: i32) -> (i32, i32, i32) {
    %c0_i32 = arith.constant 0 : i32
    %c0_i32_0 = arith.constant 0 : i32
    return %arg0, %arg1, %c0_i32 : i32, i32, i32
  }
  func.func @transform_1(%arg0: i32, %arg1: i32) -> (i32, i32) {
    %c0_i32 = arith.constant 0 : i32
    %c0_i32_0 = arith.constant 0 : i32
    %c0_i32_1 = arith.constant 0 : i32
    return %c0_i32, %c0_i32_0 : i32, i32
  }
  func.func @transform_2(%arg0: i32, %arg1: i32) -> (i32, i32, i32) {
    %c0_i32 = arith.constant 0 : i32
    %c0_i32_0 = arith.constant 0 : i32
    return %arg0, %arg1, %c0_i32 : i32, i32, i32
  }
  func.func @transform_3(%arg0: i32, %arg1: i32) -> (i32, i32, i32) {
    %c0_i32 = arith.constant 0 : i32
    %c0_i32_0 = arith.constant 0 : i32
    return %arg0, %arg1, %c0_i32 : i32, i32, i32
  }
  func.func @transform_4(%arg0: i32, %arg1: i32) -> (i32, i32, i32) {
    %c0_i32 = arith.constant 0 : i32
    %c0_i32_0 = arith.constant 0 : i32
    return %arg0, %arg1, %c0_i32 : i32, i32, i32
  }
}

</mosaic_0001>

<llo_original>
// kernel: tpu_custom_call.1
$region0: #{tpu_custom_call.1}
  #allocation0 [shape = 'u32[]', space=smem, size = 0x4, offset = 0x4, fixed_abs, tag = 'smem constant byte address 0x4 - core index']
  #allocation1 [shape = 'u32[144,128]{1,0:T(1,128)}', space=vmem, size = 0x12000, scoped, tag = 'internal scratch']
  %s0 = inlined_call_operand.hbm [shape: f32[2,8,32], index: 0, kind: input, shape index: {}]
  %s1 = inlined_call_operand.hbm [shape: f32[32,192], index: 1, kind: input, shape index: {}]
  %s2 = inlined_call_operand.hbm [shape: f32[2,8,64], index: 2, kind: output, shape index: {0}]
  %s3 = inlined_call_operand.hbm [shape: f32[2,8,64], index: 3, kind: output, shape index: {1}]
  %s4 = inlined_call_operand.hbm [shape: f32[2,8,64], index: 4, kind: output, shape index: {2}]
  %5 = xla_tuple %s2, %s3, %s4
  %s6 = sld [smem:[#allocation0]]
  $region65: #{tpu_custom_call.1} parent=0
    _
  %s8 = ssub.s32 1, %s6
  %s9 = scalar_select 0, %s8, %s6
  $region1: #{tpu_custom_call.1} parent=0
    #allocation2 [shape = 'u8[8192]{0}', space=vmem, size = 0x2000, scoped, tag = 'input window, operand 0']
    #allocation3 [shape = 's32[2]{0}', space=sflag, size = 0x8, scoped, tag = 'scoped memory for tpu_custom_call.1']
    #allocation4 [shape = 's32[2]{0}', space=sflag, size = 0x8, scoped, tag = 'scoped memory for tpu_custom_call.1']
    #allocation5 [shape = 'u8[32768]{0}', space=vmem, size = 0x8000, scoped, tag = 'input window, operand 1, single buffered']
    #allocation6 [shape = 's32[1]{0}', space=sflag, size = 0x4, scoped, tag = 'scoped memory for tpu_custom_call.1']
    #allocation7 [shape = 'u8[8192]{0}', space=vmem, size = 0x2000, scoped, tag = 'output window, operand 0']
    #allocation8 [shape = 'u8[8192]{0}', space=vmem, size = 0x2000, scoped, tag = 'output window, operand 1']
    #allocation9 [shape = 's32[2]{0}', space=sflag, size = 0x8, scoped, tag = 'scoped memory for tpu_custom_call.1']
    #allocation10 [shape = 'u8[8192]{0}', space=vmem, size = 0x2000, scoped, tag = 'output window, operand 2']
    %10 = vsyncpa [#allocation3], 0
    %s11 = scalar_lea.sflag [#allocation3], 1
    %12 = vsyncpa %s11, 0
    %13 = vsyncpa [#allocation6], 0
    %14 = vsyncpa [#allocation4], 0
    %s15 = scalar_lea.sflag [#allocation4], 1
    %16 = vsyncpa %s15, 0
    %17 = vsyncpa [#allocation9], 0
    %s18 = scalar_lea.sflag [#allocation9], 1
    %19 = vsyncpa %s18, 0
    loop: start=0, step=1, limit=4
    $region2: #{tpu_custom_call.1} parent=1 // loop_pre_header
      _
    $region3: #{tpu_custom_call.1} parent=1 // loop_header
      %s21 = sphi 0, %s25
      %p22 = scmp.ge.s32.totalorder %s21, 4
      %s28 = sphi 0, %s40
      %s29 = sphi 0, %s36
      %s30 = sphi 0, %s28
      %s31 = sphi 0, %s29
      %s32 = sphi 0, %s30
      %s33 = sphi 0, %s31
      %s45 = sphi 0, %s47
      %s48 = sphi 0, %s45
      %s49 = sphi 0, %s48
      %s65 = sphi 0, %s49
      %s69 = sphi 0, %s69
      %s71 = sphi 0, %s69
      %s72 = sphi 0, %s71
      %s86 = sphi 0, %s72
      %s94 = sphi 0, %s96
      %s97 = sphi 0, %s94
      %s98 = sphi 0, %s97
      %s114 = sphi 0, %s98
      %s122 = sphi 0, %s124
      %s125 = sphi 0, %s122
      %s126 = sphi 0, %s125
      %s142 = sphi 0, %s126
      %s150 = sphi 0, %s152
      %s153 = sphi 0, %s150
      %s154 = sphi 0, %s153
      %s170 = sphi 0, %s154
    $region4: #{tpu_custom_call.1} parent=1 // loop_header_branch
      %24 = sbr.rel (%p22) target = $region8
    $region5: #{tpu_custom_call.1} parent=1 // loop_body
      %s26 = ssub.s32 %s21, 1
      %s27 = ssub.s32 %s21, 2
      %s34 = sadd.s32 1, %s29
      %p35 = scmp.ge.s32.totalorder %s34, 1
      %s36 = scalar_select %p35, 0, %s34
      %s37 = sadd.s32 1, %s28
      %s38 = scalar_select %p35, %s37, %s28
      %p39 = scmp.ge.s32.totalorder %s38, 2
      %s40 = scalar_select %p39, 0, %s38
      %s41 = ssub.s32 %s28, %s40
      %s42 = ssub.s32 %s29, %s36
      %s43 = sor.u32 %s41, %s42
      %p44 = scmp.eq.s32.totalorder %s43, 0
      %s46 = sadd.s32 %s45, 1
      %s47 = scalar_select %p44, %s45, %s46
      %p50 = pneg %p44
      %p51 = scmp.eq.s32.totalorder %s21, 1
      %p52 = por %p50, %p51
      %p53 = scmp.ne.s32.totalorder %s45, %s48
      %p54 = scmp.eq.s32.totalorder %s21, 0
      %p55 = por %p53, %p54
      %p56 = scmp.ne.s32.totalorder %s45, %s48
      %p57 = scmp.eq.s32.totalorder %s26, 1
      %p58 = por %p56, %p57
      %p59 = scmp.ne.s32.totalorder %s48, %s49
      %p60 = scmp.eq.s32.totalorder %s26, 0
      %p61 = por %p59, %p60
      %p62 = scmp.ne.s32.totalorder %s48, %s49
      %p63 = scmp.eq.s32.totalorder %s27, 1
      %p64 = por %p62, %p63
      %p66 = scmp.ne.s32.totalorder %s49, %s65
      %p67 = scmp.eq.s32.totalorder %s27, 0
      %p68 = por %p66, %p67
      %s70 = sadd.s32 %s69, 1
      %p73 = scmp.eq.s32.totalorder %s21, 1
      %p74 = scmp.ne.s32.totalorder %s69, %s71
      %p75 = scmp.eq.s32.totalorder %s21, 0
      %p76 = por %p74, %p75
      %p77 = scmp.ne.s32.totalorder %s69, %s71
      %p78 = scmp.eq.s32.totalorder %s26, 1
      %p79 = por %p77, %p78
      %p80 = scmp.ne.s32.totalorder %s71, %s72
      %p81 = scmp.eq.s32.totalorder %s26, 0
      %p82 = por %p80, %p81
      %p83 = scmp.ne.s32.totalorder %s71, %s72
      %p84 = scmp.eq.s32.totalorder %s27, 1
      %p85 = por %p83, %p84
      %p87 = scmp.ne.s32.totalorder %s72, %s86
      %p88 = scmp.eq.s32.totalorder %s27, 0
      %p89 = por %p87, %p88
      %s90 = ssub.s32 %s28, %s40
      %s91 = ssub.s32 %s29, %s36
      %s92 = sor.u32 %s90, %s91
      %p93 = scmp.eq.s32.totalorder %s92, 0
      %s95 = sadd.s32 %s94, 1
      %s96 = scalar_select %p93, %s94, %s95
      %p99 = pneg %p93
      %p100 = scmp.eq.s32.totalorder %s21, 1
      %p101 = por %p99, %p100
      %p102 = scmp.ne.s32.totalorder %s94, %s97
      %p103 = scmp.eq.s32.totalorder %s21, 0
      %p104 = por %p102, %p103
      %p105 = scmp.ne.s32.totalorder %s94, %s97
      %p106 = scmp.eq.s32.totalorder %s26, 1
      %p107 = por %p105, %p106
      %p108 = scmp.ne.s32.totalorder %s97, %s98
      %p109 = scmp.eq.s32.totalorder %s26, 0
      %p110 = por %p108, %p109
      %p111 = scmp.ne.s32.totalorder %s97, %s98
      %p112 = scmp.eq.s32.totalorder %s27, 1
      %p113 = por %p111, %p112
      %p115 = scmp.ne.s32.totalorder %s98, %s114
      %p116 = scmp.eq.s32.totalorder %s27, 0
      %p117 = por %p115, %p116
      %s118 = ssub.s32 %s28, %s40
      %s119 = ssub.s32 %s29, %s36
      %s120 = sor.u32 %s118, %s119
      %p121 = scmp.eq.s32.totalorder %s120, 0
      %s123 = sadd.s32 %s122, 1
      %s124 = scalar_select %p121, %s122, %s123
      %p127 = pneg %p121
      %p128 = scmp.eq.s32.totalorder %s21, 1
      %p129 = por %p127, %p128
      %p130 = scmp.ne.s32.totalorder %s122, %s125
      %p131 = scmp.eq.s32.totalorder %s21, 0
      %p132 = por %p130, %p131
      %p133 = scmp.ne.s32.totalorder %s122, %s125
      %p134 = scmp.eq.s32.totalorder %s26, 1
      %p135 = por %p133, %p134
      %p136 = scmp.ne.s32.totalorder %s125, %s126
      %p137 = scmp.eq.s32.totalorder %s26, 0
      %p138 = por %p136, %p137
      %p139 = scmp.ne.s32.totalorder %s125, %s126
      %p140 = scmp.eq.s32.totalorder %s27, 1
      %p141 = por %p139, %p140
      %p143 = scmp.ne.s32.totalorder %s126, %s142
      %p144 = scmp.eq.s32.totalorder %s27, 0
      %p145 = por %p143, %p144
      %s146 = ssub.s32 %s28, %s40
      %s147 = ssub.s32 %s29, %s36
      %s148 = sor.u32 %s146, %s147
      %p149 = scmp.eq.s32.totalorder %s148, 0
      %s151 = sadd.s32 %s150, 1
      %s152 = scalar_select %p149, %s150, %s151
      %p155 = pneg %p149
      %p156 = scmp.eq.s32.totalorder %s21, 1
      %p157 = por %p155, %p156
      %p158 = scmp.ne.s32.totalorder %s150, %s153
      %p159 = scmp.eq.s32.totalorder %s21, 0
      %p160 = por %p158, %p159
      %p161 = scmp.ne.s32.totalorder %s150, %s153
      %p162 = scmp.eq.s32.totalorder %s26, 1
      %p163 = por %p161, %p162
      %p164 = scmp.ne.s32.totalorder %s153, %s154
      %p165 = scmp.eq.s32.totalorder %s26, 0
      %p166 = por %p164, %p165
      %p167 = scmp.ne.s32.totalorder %s153, %s154
      %p168 = scmp.eq.s32.totalorder %s27, 1
      %p169 = por %p167, %p168
      %p171 = scmp.ne.s32.totalorder %s154, %s170
      %p172 = scmp.eq.s32.totalorder %s27, 0
      %p173 = por %p171, %p172
      %p174 = scmp.le.s32.totalorder 1, %s21
      %p175 = scmp.lt.s32.totalorder %s21, 3
      %p176 = pnand %p174, %p175
      %p177 = pneg %p176
      // Predicated region
      $region9: #{tpu_custom_call.1} parent=5 // pred_check
        _
      $region10: #{tpu_custom_call.1} parent=5 // pred_check_branch
        %179 = sbr.rel (%p176) target = $region12
      $region11: #{tpu_custom_call.1} parent=5 // pred_region
        %s180 = ssub.s32 %s21, 1
        // Predicated region
        $region13: #{tpu_custom_call.1} parent=11 // pred_check
          %p181 = pneg %p82
        $region14: #{tpu_custom_call.1} parent=11 // pred_check_branch
          %183 = sbr.rel (%p181) target = $region16
        $region15: #{tpu_custom_call.1} parent=11 // pred_region
          %s185 = ssub.s32 1024, 1024
          %186 = vsyncadd [#allocation6], %s185
          %s187 = sshll.u32 [#allocation5], 4
          %s188 = int_to_ptr.vmem [resolvable:$true] %s187
          %193 = dma.hbm_to_vmem [thread:$0]  %s1, 1024, %s188, [#allocation6], 256, 256, 16
        $region16: #{tpu_custom_call.1} parent=11 // pred_fallthru
          _
      $region12: #{tpu_custom_call.1} parent=5 // pred_fallthru
        _
      %p194 = scmp.lt.s32.totalorder %s21, 2
      // Predicated region
      $region17: #{tpu_custom_call.1} parent=5 // pred_check
        %p195 = pneg %p194
      $region18: #{tpu_custom_call.1} parent=5 // pred_check_branch
        %197 = sbr.rel (%p195) target = $region20
      $region19: #{tpu_custom_call.1} parent=5 // pred_region
        // Predicated region
        $region21: #{tpu_custom_call.1} parent=19 // pred_check
          %p198 = pneg %p55
        $region22: #{tpu_custom_call.1} parent=19 // pred_check_branch
          %200 = sbr.rel (%p198) target = $region24
        $region23: #{tpu_custom_call.1} parent=19 // pred_region
          %s201 = sand.u32 %s45, 1
          %s202 = scalar_lea.sflag [#allocation3], %s201
          %s203 = sand.u32 %s45, 1
          %s204 = smul.addr %s203, 8
          %s205 = scalar_lea.vmem [#allocation2], %s204
          %s207 = ssub.s32 128, 128
          %208 = vsyncadd %s202, %s207
          %s209 = sadd.s32 %s29, %s28
          %s210 = smul.addr %s209, 128
          %s211 = scalar_lea.hbm %s0, %s210
          %s213 = sshll.u32 %s205, 4
          %s214 = int_to_ptr.vmem [resolvable:$true] %s213
          %216 = dma.hbm_to_vmem [thread:$0]  %s211, 128, %s214, %s202
        $region24: #{tpu_custom_call.1} parent=19 // pred_fallthru
          _
      $region20: #{tpu_custom_call.1} parent=5 // pred_fallthru
        _
      %p217 = scmp.le.s32.totalorder 1, %s21
      %p218 = scmp.lt.s32.totalorder %s21, 3
      %p219 = pnand %p217, %p218
      %p220 = pneg %p219
      // Predicated region
      $region25: #{tpu_custom_call.1} parent=5 // pred_check
        _
      $region26: #{tpu_custom_call.1} parent=5 // pred_check_branch
        %222 = sbr.rel (%p219) target = $region28
      $region27: #{tpu_custom_call.1} parent=5 // pred_region
        %s223 = ssub.s32 %s21, 1
        %s224 = sand.u32 %s48, 1
        %s225 = scalar_lea.sflag [#allocation3], %s224
        %s226 = sand.u32 %s48, 1
        %s227 = smul.addr %s226, 8
        %s228 = scalar_lea.vmem [#allocation2], %s227
        // Predicated region
        $region29: #{tpu_custom_call.1} parent=27 // pred_check
          %p229 = pneg %p61
        $region30: #{tpu_custom_call.1} parent=27 // pred_check_branch
          %231 = sbr.rel (%p229) target = $region32
        $region31: #{tpu_custom_call.1} parent=27 // pred_region
          %232 = dma.done %s225, 128
        $region32: #{tpu_custom_call.1} parent=27 // pred_fallthru
          _
        // Predicated region
        $region33: #{tpu_custom_call.1} parent=27 // pred_check
          %p233 = pneg %p82
        $region34: #{tpu_custom_call.1} parent=27 // pred_check_branch
          %235 = sbr.rel (%p233) target = $region36
        $region35: #{tpu_custom_call.1} parent=27 // pred_region
          %236 = dma.done [#allocation6], 1024
        $region36: #{tpu_custom_call.1} parent=27 // pred_fallthru
          _
        %s237 = sand.u32 %s48, 1
        %s238 = scalar_lea.sflag [#allocation3], %s237
        %s239 = sand.u32 %s48, 1
        %s240 = smul.addr %s239, 8
        %s241 = scalar_lea.vmem [#allocation2], %s240
        %p242 = pneg %p61
        %p243 = pneg %p58
        %p244 = pneg %p82
        %p245 = pneg %p79
        %p246 = pneg %p110
        %p247 = pneg %p107
        %s248 = sand.u32 %s97, 1
        %s249 = scalar_lea.sflag [#allocation4], %s248
        %s250 = sand.u32 %s97, 1
        %s251 = smul.addr %s250, 8
        %s252 = scalar_lea.vmem [#allocation7], %s251
        %p253 = pneg %p138
        %p254 = pneg %p135
        %s255 = sand.u32 %s26, 1
        %s256 = scalar_lea.sflag [#allocation9], %s255
        %s257 = sand.u32 %s125, 1
        %s258 = smul.addr %s257, 8
        %s259 = scalar_lea.vmem [#allocation8], %s258
        %p260 = pneg %p166
        %p261 = pneg %p163
        %s262 = sand.u32 %s26, 1
        %s263 = scalar_lea.sflag [#allocation9], %s262
        %s264 = sand.u32 %s153, 1
        %s265 = smul.addr %s264, 8
        %s266 = scalar_lea.vmem [#allocation10], %s265
        %v267 = vld [vmem:[%s228] sm:$0xff]
        %v268 = vld [vmem:[#allocation5] sm:$0xff]
        %v269 = vld [vmem:[#allocation5 + $0x8] sm:$0xff]
        %v270 = vld [vmem:[#allocation5 + $0x10] sm:$0xff]
        %v271 = vld [vmem:[#allocation5 + $0x18] sm:$0xff]
        %v272 = vld [vmem:[#allocation5 + $0x20] sm:$0xff]
        %v273 = vld [vmem:[#allocation5 + $0x28] sm:$0xff]
        %v274 = vld [vmem:[#allocation5 + $0x30] sm:$0xff]
        %v275 = vld [vmem:[#allocation5 + $0x38] sm:$0xff]
        %vm276 = vcmask 261120
        %v278 = vsel %vm276, %v267, 0
        %280 = vmatprep.subr.mxu0 0.0
        %281 = vmatpush1.msra.mxu0 0.0
        %282 = vmatprep.subr.mxu0 0.0
        %283 = vmatpush1.msra.mxu0 0.0
        %284 = vmatprep.subr.mxu0 0.0
        %285 = vmatpush1.msra.mxu0 0.0
        %286 = vmatprep.subr.mxu0 0.0
        %287 = vmatpush1.msra.mxu0 0.0
        %288 = vmatprep.subr.mxu0 0.0
        %289 = vmatpush1.msra.mxu0 0.0
        %290 = vmatprep.subr.mxu0 0.0
        %291 = vmatpush1.msra.mxu0 0.0
        %292 = vmatprep.subr.mxu0 0.0
        %293 = vmatpush1.msra.mxu0 0.0
        %294 = vmatprep.subr.mxu0 0.0
        %295 = vmatpush1.msra.mxu0 0.0
        %296 = vmatprep.subr.mxu0 0.0
        %297 = vmatpush1.msra.mxu0 0.0
        %298 = vmatprep.subr.mxu0 0.0
        %299 = vmatpush1.msra.mxu0 0.0
        %300 = vmatprep.subr.mxu0 0.0
        %301 = vmatpush1.msra.mxu0 0.0
        %302 = vmatprep.subr.mxu0 0.0
        %303 = vmatpush1.msra.mxu0 0.0
        %304 = vmatprep.subr.mxu0 %v275
        %305 = vmatpush1.msra.mxu0 %v274
        %306 = vmatprep.subr.mxu0 %v273
        %307 = vmatpush1.msra.mxu0 %v272
        %308 = vmatprep.subr.mxu0 %v271
        %309 = vmatpush1.msra.mxu0 %v270
        %310 = vmatprep.subr.mxu0 %v269
        %311 = vmatpush1.msra.mxu0 %v268
        %312 = vmatprep.subr.mxu0 0.0
        %313 = vmatpush2.msra.mxu0 0.0
        %314 = vmatprep.subr.mxu0 0.0
        %315 = vmatpush2.msra.mxu0 0.0
        %316 = vmatprep.subr.mxu0 0.0
        %317 = vmatpush2.msra.mxu0 0.0
        %318 = vmatprep.subr.mxu0 0.0
        %319 = vmatpush2.msra.mxu0 0.0
        %320 = vmatprep.subr.mxu0 0.0
        %321 = vmatpush2.msra.mxu0 0.0
        %322 = vmatprep.subr.mxu0 0.0
        %323 = vmatpush2.msra.mxu0 0.0
        %324 = vmatprep.subr.mxu0 0.0
        %325 = vmatpush2.msra.mxu0 0.0
        %326 = vmatprep.subr.mxu0 0.0
        %327 = vmatpush2.msra.mxu0 0.0
        %328 = vmatprep.subr.mxu0 0.0
        %329 = vmatpush2.msra.mxu0 0.0
        %330 = vmatprep.subr.mxu0 0.0
        %331 = vmatpush2.msra.mxu0 0.0
        %332 = vmatprep.subr.mxu0 0.0
        %333 = vmatpush2.msra.mxu0 0.0
        %334 = vmatprep.subr.mxu0 0.0
        %335 = vmatpush2.msra.mxu0 0.0
        %336 = vmatprep.subr.mxu0 0.0
        %337 = vmatpush2.msra.mxu0 0.0
        %338 = vmatprep.subr.mxu0 0.0
        %339 = vmatpush2.msra.mxu0 0.0
        %340 = vmatprep.subr.mxu0 0.0
        %341 = vmatpush2.msra.mxu0 0.0
        %342 = vmatprep.subr.mxu0 0.0
        %343 = vmatpush2.msra.mxu0 0.0
        %344 = vmatprep.mubr.f32.mxu0 0.0
        %345 = vmatmul.mubr.f32.gmra.mxu0 %v278
        %v346 = vpop.f32.mrf.mxu0
        %v347 = vadd.f32 0.0, %v346
        %v348 = vpop.f32.mrf.mxu0
        %v349 = vadd.f32 0.0, %v348
        %350 = vdwg.mxu0
        %v351 = vmul.f32 %v347, 0.17677669
        %vm352 = vcmask 523264
        %353 = vst.msk [vmem:[%s252] sm:$0xff] %vm352, %v351
        %355 = vrot.lane.b32.xlu0 %v347, 64
        %v356 = vpop.permute.xlu0 %355
        %358 = vst.msk [vmem:[%s259] sm:$0xff] %vm352, %v356
        %359 = vst.msk [vmem:[%s266] sm:$0xff] %vm352, %v349
        %s360 = sand.u32 %s97, 1
        %s361 = scalar_lea.sflag [#allocation4], %s360
        %s362 = sand.u32 %s97, 1
        %s363 = smul.addr %s362, 8
        %s364 = scalar_lea.vmem [#allocation7], %s363
        %s365 = sand.u32 %s26, 1
        %s366 = scalar_lea.sflag [#allocation9], %s365
        %s367 = sand.u32 %s125, 1
        %s368 = smul.addr %s367, 8
        %s369 = scalar_lea.vmem [#allocation8], %s368
        %s370 = sand.u32 %s26, 1
        %s371 = scalar_lea.sflag [#allocation9], %s370
        %s372 = sand.u32 %s153, 1
        %s373 = smul.addr %s372, 8
        %s374 = scalar_lea.vmem [#allocation10], %s373
        // Predicated region
        $region37: #{tpu_custom_call.1} parent=27 // pred_check
          %p375 = pneg %p107
        $region38: #{tpu_custom_call.1} parent=27 // pred_check_branch
          %377 = sbr.rel (%p375) target = $region40
        $region39: #{tpu_custom_call.1} parent=27 // pred_region
          %s379 = ssub.s32 128, 128
          %380 = vsyncadd %s361, %s379
          %s381 = sadd.s32 %s31, %s30
          %s382 = smul.addr %s381, 128
          %s383 = scalar_lea.hbm %s2, %s382
          %s385 = sshll.u32 %s364, 4
          %s386 = int_to_ptr.vmem [resolvable:$true] %s385
          %388 = dma.vmem_to_hbm [thread:$0]  %s386, 128, %s383, %s361
        $region40: #{tpu_custom_call.1} parent=27 // pred_fallthru
          _
        // Predicated region
        $region41: #{tpu_custom_call.1} parent=27 // pred_check
          %p389 = pneg %p135
        $region42: #{tpu_custom_call.1} parent=27 // pred_check_branch
          %391 = sbr.rel (%p389) target = $region44
        $region43: #{tpu_custom_call.1} parent=27 // pred_region
          %s393 = ssub.s32 128, 128
          %394 = vsyncadd %s366, %s393
          %s395 = sadd.s32 %s31, %s30
          %s396 = smul.addr %s395, 128
          %s397 = scalar_lea.hbm %s3, %s396
          %s399 = sshll.u32 %s369, 4
          %s400 = int_to_ptr.vmem [resolvable:$true] %s399
          %402 = dma.vmem_to_hbm [thread:$0]  %s400, 128, %s397, %s366
        $region44: #{tpu_custom_call.1} parent=27 // pred_fallthru
          _
        // Predicated region
        $region45: #{tpu_custom_call.1} parent=27 // pred_check
          %p403 = pneg %p163
        $region46: #{tpu_custom_call.1} parent=27 // pred_check_branch
          %405 = sbr.rel (%p403) target = $region48
        $region47: #{tpu_custom_call.1} parent=27 // pred_region
          %s407 = ssub.s32 128, 128
          %408 = vsyncadd %s371, %s407
          %s409 = sadd.s32 %s31, %s30
          %s410 = smul.addr %s409, 128
          %s411 = scalar_lea.hbm %s4, %s410
          %s413 = sshll.u32 %s374, 4
          %s414 = int_to_ptr.vmem [resolvable:$true] %s413
          %416 = dma.vmem_to_hbm [thread:$0]  %s414, 128, %s411, %s371
        $region48: #{tpu_custom_call.1} parent=27 // pred_fallthru
          _
      $region28: #{tpu_custom_call.1} parent=5 // pred_fallthru
        _
      %p417 = scmp.le.s32.totalorder 2, %s21
      // Predicated region
      $region49: #{tpu_custom_call.1} parent=5 // pred_check
        %p418 = pneg %p417
      $region50: #{tpu_custom_call.1} parent=5 // pred_check_branch
        %420 = sbr.rel (%p418) target = $region52
      $region51: #{tpu_custom_call.1} parent=5 // pred_region
        %s421 = ssub.s32 %s21, 2
        // Predicated region
        $region53: #{tpu_custom_call.1} parent=51 // pred_check
          %p422 = pneg %p113
        $region54: #{tpu_custom_call.1} parent=51 // pred_check_branch
          %424 = sbr.rel (%p422) target = $region56
        $region55: #{tpu_custom_call.1} parent=51 // pred_region
          %s425 = sand.u32 %s98, 1
          %s426 = scalar_lea.sflag [#allocation4], %s425
          %s427 = sand.u32 %s98, 1
          %s428 = smul.addr %s427, 8
          %s429 = scalar_lea.vmem [#allocation7], %s428
          %430 = dma.done %s426, 128
        $region56: #{tpu_custom_call.1} parent=51 // pred_fallthru
          _
        // Predicated region
        $region57: #{tpu_custom_call.1} parent=51 // pred_check
          %p431 = pneg %p141
        $region58: #{tpu_custom_call.1} parent=51 // pred_check_branch
          %433 = sbr.rel (%p431) target = $region60
        $region59: #{tpu_custom_call.1} parent=51 // pred_region
          %s434 = sand.u32 %s27, 1
          %s435 = scalar_lea.sflag [#allocation9], %s434
          %s436 = sand.u32 %s126, 1
          %s437 = smul.addr %s436, 8
          %s438 = scalar_lea.vmem [#allocation8], %s437
          %439 = dma.done %s435, 128
        $region60: #{tpu_custom_call.1} parent=51 // pred_fallthru
          _
        // Predicated region
        $region61: #{tpu_custom_call.1} parent=51 // pred_check
          %p440 = pneg %p169
        $region62: #{tpu_custom_call.1} parent=51 // pred_check_branch
          %442 = sbr.rel (%p440) target = $region64
        $region63: #{tpu_custom_call.1} parent=51 // pred_region
          %s443 = sand.u32 %s27, 1
          %s444 = scalar_lea.sflag [#allocation9], %s443
          %s445 = sand.u32 %s154, 1
          %s446 = smul.addr %s445, 8
          %s447 = scalar_lea.vmem [#allocation10], %s446
          %448 = dma.done %s444, 128
        $region64: #{tpu_custom_call.1} parent=51 // pred_fallthru
          _
      $region52: #{tpu_custom_call.1} parent=5 // pred_fallthru
        _
    $region6: #{tpu_custom_call.1} parent=1 // loop_footer
      %s25 = sadd.s32 1, %s21
    $region7: #{tpu_custom_call.1} parent=1 // loop_footer_branch
      %20 = sbr.rel target = $region3
    $region8: #{tpu_custom_call.1} parent=1 // loop_exit
      _
    %449 = vsyncpa [#allocation3], 1
    %s450 = scalar_lea.sflag [#allocation3], 1
    %451 = vsyncpa %s450, 1
    %452 = vsyncpa [#allocation6], 1
    %453 = vsyncpa [#allocation4], 1
    %s454 = scalar_lea.sflag [#allocation4], 1
    %455 = vsyncpa %s454, 1
    %456 = vsyncpa [#allocation9], 1
    %s457 = scalar_lea.sflag [#allocation9], 1
    %458 = vsyncpa %s457, 1

</llo_original>
